<compile_context>
chip_gen: v5e
topology: v5e:2x2
jax: 0.10.0
libtpu: 0.0.40
codegen_flags: <defaults>
</compile_context>

<pallas_src>
import jax
import jax.numpy as jnp
from jax import lax
from jax.experimental import pallas as pl
from jax.experimental.pallas import tpu as pltpu

IN_DIM = 3
RAND_DIM = 3
OUT_DIM = 3
HIDDEN = 128
K_IN = IN_DIM + RAND_DIM
OUT_LANES = 16          # packed output slab width (lanes 0:3 / 3:6 / 6:9 used)
BINARIZE_SETTING = 0    # module global in the reference code


def _round_up(x, m):
    return ((x + m - 1) // m) * m


def _net_kernel(x_ref,
                w1_ref, b1_ref, w2_ref, b2_ref, w3_ref, b3_ref,
                w4_ref, b4_ref, w5_ref, b5_ref, w6_ref, b6_ref,
                out_ref):
    x = x_ref[...]                                    # (TB, 6)

    # --- enc1: contraction dim is only 6 -> VPU broadcast FMAs, no MXU pass ---
    w1 = w1_ref[...]                                  # (6, 128)
    h = b1_ref[...]                                   # (1, 128) -> broadcasts
    for k in range(K_IN):                             # static unroll (6 FMAs)
        h = h + x[:, k:k + 1] * w1[k:k + 1, :]
    h = jnp.maximum(h, 0.0)

    # --- enc2: clean 128x128 MXU matmul ---
    h = jnp.dot(h, w2_ref[...], precision=lax.Precision.DEFAULT,
                preferred_element_type=jnp.float32) + b2_ref[...]
    h = jnp.maximum(h, 0.0)

    # --- enc3: w3 zero-padded to (128,128); lanes 3..127 of z are exactly 0 ---
    z = jnp.dot(h, w3_ref[...], precision=lax.Precision.DEFAULT,
                preferred_element_type=jnp.float32) + b3_ref[...]
    x_out = jnp.where(z > 0.5, 1.0, 0.0)              # binarize (setting 0)

    # --- dec1: K=3 -> 3 VPU broadcast FMAs (removes a mostly-zero MXU pass) ---
    w4 = w4_ref[...]                                  # (3, 128)
    r = b4_ref[...]                                   # (1, 128) -> broadcasts
    for k in range(OUT_DIM):                          # static unroll (3 FMAs)
        r = r + x_out[:, k:k + 1] * w4[k:k + 1, :]
    r = jnp.maximum(r, 0.0)

    # --- dec2: clean 128x128 MXU matmul ---
    r = jnp.dot(r, w5_ref[...], precision=lax.Precision.DEFAULT,
                preferred_element_type=jnp.float32) + b5_ref[...]
    r = jnp.maximum(r, 0.0)

    # --- dec3: w6 replicated into output-slab lanes 3:6 and 6:9 ---
    r = jnp.dot(r, w6_ref[...], precision=lax.Precision.DEFAULT,
                preferred_element_type=jnp.float32) + b6_ref[...]
    # lanes 3..5 == lanes 6..8 == decoder output; every other lane is 0

    # --- epilogue: pack the three results into one narrow (TB, 16) slab ------
    xo = x_out[:, :OUT_LANES]                         # data in lanes 0:3
    rr = r[:, :OUT_LANES]                             # data in lanes 3:9
    lane = lax.broadcasted_iota(jnp.int32, (1, OUT_LANES), 1)   # (1,16), bcast
    slab = jnp.where(lane < OUT_DIM, xo,
           jnp.where(lane < 2 * OUT_DIM, jnp.where(rr > 0.5, 1.0, 0.0),
           jnp.where(lane < 3 * OUT_DIM, jax.nn.sigmoid(rr), 0.0)))
    out_ref[...] = slab


def _prepare_params(params):
    """Pad/replicate the narrow weights once (outside the kernel)."""
    (w1, b1, w2, b2, w3, b3, w4, b4, w5, b5, w6, b6) = params
    f32 = jnp.float32
    w3p = jnp.zeros((HIDDEN, HIDDEN), f32).at[:, 0:OUT_DIM].set(w3)
    b3p = jnp.zeros((1, HIDDEN), f32).at[:, 0:OUT_DIM].set(b3)
    # dec1 stays un-padded (handled by VPU FMAs in-kernel).
    w6s = (jnp.zeros((HIDDEN, HIDDEN), f32)
           .at[:, OUT_DIM:2 * OUT_DIM].set(w6)
           .at[:, 2 * OUT_DIM:3 * OUT_DIM].set(w6))
    b6s = (jnp.zeros((1, HIDDEN), f32)
           .at[:, OUT_DIM:2 * OUT_DIM].set(b6)
           .at[:, 2 * OUT_DIM:3 * OUT_DIM].set(b6))
    return (w1, b1, w2, b2, w3p, b3p, w4, b4, w5, b5, w6s, b6s)


def net_forward(x, params, tile_b=1024):
    """x: (B, in_dim + rand_dim) float32. Returns (x_out, x_recon_b, x_recon_s).

    tile_b: batch tile; sweep 512..4096 for large B (default 1024 keeps
    VMEM use ~6 MiB, safe even on v7x's 64 MiB VMEM).  On v7x prefer a tb
    that yields an even grid so both TensorCores get batch tiles.
    """
    B = x.shape[0]
    kparams = _prepare_params(params)

    # Batch tiling: tile must be a multiple of 8; pad B up to a whole tile.
    tb = min(tile_b, _round_up(B, 8))
    Bp = _round_up(B, tb)
    if Bp != B:
        x = jnp.pad(x, ((0, Bp - B), (0, 0)))
    grid = (Bp // tb,)

    x_spec = pl.BlockSpec((tb, K_IN), lambda i: (i, 0))
    # Weights/biases: constant index_map -> VMEM-resident across grid steps.
    w_specs = [pl.BlockSpec(p.shape, lambda i: (0, 0)) for p in kparams]
    out_spec = pl.BlockSpec((tb, OUT_LANES), lambda i: (i, 0))

    flops = 2 * Bp * (K_IN * HIDDEN + OUT_DIM * HIDDEN + 4 * HIDDEN * HIDDEN)
    bytes_accessed = (Bp * K_IN * 4
                      + sum(int(p.size) * 4 for p in kparams)
                      + Bp * OUT_LANES * 4)

    slab = pl.pallas_call(
        _net_kernel,
        out_shape=jax.ShapeDtypeStruct((Bp, OUT_LANES), jnp.float32),
        grid_spec=pltpu.PrefetchScalarGridSpec(
            num_scalar_prefetch=0,
            grid=grid,
            in_specs=[x_spec] + w_specs,
            out_specs=out_spec,
        ),
        compiler_params=pltpu.CompilerParams(
            dimension_semantics=("parallel",),
            vmem_limit_bytes=32 * 1024 * 1024,
        ),
        cost_estimate=pl.CostEstimate(
            flops=flops,
            transcendentals=Bp * OUT_LANES,
            bytes_accessed=bytes_accessed,
        ),
    )(x, *kparams)

    x_out = slab[:B, 0:OUT_DIM]
    x_recon_b = slab[:B, OUT_DIM:2 * OUT_DIM]
    x_recon_s = slab[:B, 2 * OUT_DIM:3 * OUT_DIM]
    return x_out, x_recon_b, x_recon_s


def init_params(key):
    """Deterministic init. Weights stored transposed: (in_features, out_features).
    Biases stored as (1, out_features)."""
    dims = [
        (IN_DIM + RAND_DIM, HIDDEN),  # enc1
        (HIDDEN, HIDDEN),             # enc2
        (HIDDEN, OUT_DIM),            # enc3
        (OUT_DIM, HIDDEN),            # dec1
        (HIDDEN, HIDDEN),             # dec2
        (HIDDEN, IN_DIM),             # dec3
    ]
    params = []
    for (din, dout) in dims:
        key, kw, kb = jax.random.split(key, 3)
        w = jax.random.normal(kw, (din, dout), dtype=jnp.float32) * 0.1
        b = jax.random.normal(kb, (1, dout), dtype=jnp.float32) * 0.1
        params.extend([w, b])
    return tuple(params)


if __name__ == "__main__":
    key = jax.random.PRNGKey(0)
    key, kx, kx2 = jax.random.split(key, 3)
    params = init_params(key)

    # --- Test 1: small batch (not a multiple of 8) vs pure-JAX reference -----
    B = 10
    x = jax.random.normal(kx, (B, IN_DIM + RAND_DIM), dtype=jnp.float32)

    x_out, x_recon_b, x_recon_s = net_forward(x, params)
    jax.block_until_ready((x_out, x_recon_b, x_recon_s))

    def ref_forward(x, params):
        (w1, b1, w2, b2, w3, b3, w4, b4, w5, b5, w6, b6) = params
        h = jnp.maximum(x @ w1 + b1, 0.0)
        h = jnp.maximum(h @ w2 + b2, 0.0)
        z = h @ w3 + b3
        zb = jnp.where(z > 0.5, z + (1.0 - z), z - z)       # literal PyTorch expr
        r = jnp.maximum(zb @ w4 + b4, 0.0)
        r = jnp.maximum(r @ w5 + b5, 0.0)
        r = r @ w6 + b6
        rb = jnp.where(r > 0.5, r + (1.0 - r), r - r)
        return zb, rb, jax.nn.sigmoid(r)

    ro, rb, rs = ref_forward(x, params)
    assert x_out.shape == (B, OUT_DIM)
    assert x_recon_b.shape == (B, IN_DIM)
    assert x_recon_s.shape == (B, IN_DIM)
    assert jnp.allclose(x_out, ro, atol=1e-4)
    assert jnp.allclose(x_recon_b, rb, atol=1e-4)
    assert jnp.allclose(x_recon_s, rs, atol=1e-4)

    # --- Test 2: multi-tile grid self-consistency (grid of 3 vs grid of 1) ---
    B2 = 48
    x2 = jax.random.normal(kx2, (B2, IN_DIM + RAND_DIM), dtype=jnp.float32)
    a = net_forward(x2, params, tile_b=16)   # grid = (3,)
    b = net_forward(x2, params, tile_b=64)   # grid = (1,)
    jax.block_until_ready((a, b))
    for ai, bi in zip(a, b):
        assert jnp.allclose(ai, bi, atol=1e-6)

    print("KERNEL_OK")
</pallas_src>

<mosaic_0001>
module attributes {stable_mosaic.version = 11 : i64} {
  func.func @_net_kernel(%arg0: i32, %arg1: memref<16x6xf32, #tpu.memory_space<vmem>>, %arg2: memref<6x128xf32, #tpu.memory_space<vmem>>, %arg3: memref<1x128xf32, #tpu.memory_space<vmem>>, %arg4: memref<128x128xf32, #tpu.memory_space<vmem>>, %arg5: memref<1x128xf32, #tpu.memory_space<vmem>>, %arg6: memref<128x128xf32, #tpu.memory_space<vmem>>, %arg7: memref<1x128xf32, #tpu.memory_space<vmem>>, %arg8: memref<3x128xf32, #tpu.memory_space<vmem>>, %arg9: memref<1x128xf32, #tpu.memory_space<vmem>>, %arg10: memref<128x128xf32, #tpu.memory_space<vmem>>, %arg11: memref<1x128xf32, #tpu.memory_space<vmem>>, %arg12: memref<128x128xf32, #tpu.memory_space<vmem>>, %arg13: memref<1x128xf32, #tpu.memory_space<vmem>>, %arg14: memref<16x16xf32, #tpu.memory_space<vmem>>) attributes {dimension_semantics = [#tpu.dimension_semantics<parallel>], iteration_bounds = array<i64: 1>, scalar_prefetch = 0 : i64, scratch_operands = 0 : i64, tpu.core_type = #tpu.core_type<tc>, window_params = [{transform_indices = @transform_0, window_bounds = array<i64: 16, 6>}, {pipeline_mode = #tpu.pipeline_mode<synchronous>, transform_indices = @transform_1, window_bounds = array<i64: 6, 128>}, {pipeline_mode = #tpu.pipeline_mode<synchronous>, transform_indices = @transform_2, window_bounds = array<i64: 1, 128>}, {pipeline_mode = #tpu.pipeline_mode<synchronous>, transform_indices = @transform_3, window_bounds = array<i64: 128, 128>}, {pipeline_mode = #tpu.pipeline_mode<synchronous>, transform_indices = @transform_4, window_bounds = array<i64: 1, 128>}, {pipeline_mode = #tpu.pipeline_mode<synchronous>, transform_indices = @transform_5, window_bounds = array<i64: 128, 128>}, {pipeline_mode = #tpu.pipeline_mode<synchronous>, transform_indices = @transform_6, window_bounds = array<i64: 1, 128>}, {pipeline_mode = #tpu.pipeline_mode<synchronous>, transform_indices = @transform_7, window_bounds = array<i64: 3, 128>}, {pipeline_mode = #tpu.pipeline_mode<synchronous>, transform_indices = @transform_8, window_bounds = array<i64: 1, 128>}, {pipeline_mode = #tpu.pipeline_mode<synchronous>, transform_indices = @transform_9, window_bounds = array<i64: 128, 128>}, {pipeline_mode = #tpu.pipeline_mode<synchronous>, transform_indices = @transform_10, window_bounds = array<i64: 1, 128>}, {pipeline_mode = #tpu.pipeline_mode<synchronous>, transform_indices = @transform_11, window_bounds = array<i64: 128, 128>}, {pipeline_mode = #tpu.pipeline_mode<synchronous>, transform_indices = @transform_12, window_bounds = array<i64: 1, 128>}, {transform_indices = @transform_13, window_bounds = array<i64: 16, 16>}]} {
    %c0 = arith.constant 0 : index
    %c0_0 = arith.constant 0 : index
    %0 = vector.load %arg1[%c0, %c0_0] : memref<16x6xf32, #tpu.memory_space<vmem>>, vector<16x6xf32>
    %c0_1 = arith.constant 0 : index
    %c0_2 = arith.constant 0 : index
    %1 = vector.load %arg2[%c0_1, %c0_2] : memref<6x128xf32, #tpu.memory_space<vmem>>, vector<6x128xf32>
    %c0_3 = arith.constant 0 : index
    %c0_4 = arith.constant 0 : index
    %2 = vector.load %arg3[%c0_3, %c0_4] : memref<1x128xf32, #tpu.memory_space<vmem>>, vector<1x128xf32>
    %3 = vector.extract_strided_slice %0 {offsets = [0, 0], sizes = [16, 1], strides = [1, 1]} : vector<16x6xf32> to vector<16x1xf32>
    %4 = vector.extract_strided_slice %1 {offsets = [0, 0], sizes = [1, 128], strides = [1, 1]} : vector<6x128xf32> to vector<1x128xf32>
    %5 = vector.broadcast %3 : vector<16x1xf32> to vector<16x128xf32>
    %6 = vector.broadcast %4 : vector<1x128xf32> to vector<16x128xf32>
    %7 = arith.mulf %5, %6 : vector<16x128xf32>
    %8 = vector.broadcast %2 : vector<1x128xf32> to vector<16x128xf32>
    %9 = arith.addf %8, %7 : vector<16x128xf32>
    %10 = vector.extract_strided_slice %0 {offsets = [0, 1], sizes = [16, 1], strides = [1, 1]} : vector<16x6xf32> to vector<16x1xf32>
    %11 = vector.extract_strided_slice %1 {offsets = [1, 0], sizes = [1, 128], strides = [1, 1]} : vector<6x128xf32> to vector<1x128xf32>
    %12 = vector.broadcast %10 : vector<16x1xf32> to vector<16x128xf32>
    %13 = vector.broadcast %11 : vector<1x128xf32> to vector<16x128xf32>
    %14 = arith.mulf %12, %13 : vector<16x128xf32>
    %15 = arith.addf %9, %14 : vector<16x128xf32>
    %16 = vector.extract_strided_slice %0 {offsets = [0, 2], sizes = [16, 1], strides = [1, 1]} : vector<16x6xf32> to vector<16x1xf32>
    %17 = vector.extract_strided_slice %1 {offsets = [2, 0], sizes = [1, 128], strides = [1, 1]} : vector<6x128xf32> to vector<1x128xf32>
    %18 = vector.broadcast %16 : vector<16x1xf32> to vector<16x128xf32>
    %19 = vector.broadcast %17 : vector<1x128xf32> to vector<16x128xf32>
    %20 = arith.mulf %18, %19 : vector<16x128xf32>
    %21 = arith.addf %15, %20 : vector<16x128xf32>
    %22 = vector.extract_strided_slice %0 {offsets = [0, 3], sizes = [16, 1], strides = [1, 1]} : vector<16x6xf32> to vector<16x1xf32>
    %23 = vector.extract_strided_slice %1 {offsets = [3, 0], sizes = [1, 128], strides = [1, 1]} : vector<6x128xf32> to vector<1x128xf32>
    %24 = vector.broadcast %22 : vector<16x1xf32> to vector<16x128xf32>
    %25 = vector.broadcast %23 : vector<1x128xf32> to vector<16x128xf32>
    %26 = arith.mulf %24, %25 : vector<16x128xf32>
    %27 = arith.addf %21, %26 : vector<16x128xf32>
    %28 = vector.extract_strided_slice %0 {offsets = [0, 4], sizes = [16, 1], strides = [1, 1]} : vector<16x6xf32> to vector<16x1xf32>
    %29 = vector.extract_strided_slice %1 {offsets = [4, 0], sizes = [1, 128], strides = [1, 1]} : vector<6x128xf32> to vector<1x128xf32>
    %30 = vector.broadcast %28 : vector<16x1xf32> to vector<16x128xf32>
    %31 = vector.broadcast %29 : vector<1x128xf32> to vector<16x128xf32>
    %32 = arith.mulf %30, %31 : vector<16x128xf32>
    %33 = arith.addf %27, %32 : vector<16x128xf32>
    %34 = vector.extract_strided_slice %0 {offsets = [0, 5], sizes = [16, 1], strides = [1, 1]} : vector<16x6xf32> to vector<16x1xf32>
    %35 = vector.extract_strided_slice %1 {offsets = [5, 0], sizes = [1, 128], strides = [1, 1]} : vector<6x128xf32> to vector<1x128xf32>
    %36 = vector.broadcast %34 : vector<16x1xf32> to vector<16x128xf32>
    %37 = vector.broadcast %35 : vector<1x128xf32> to vector<16x128xf32>
    %38 = arith.mulf %36, %37 : vector<16x128xf32>
    %39 = arith.addf %33, %38 : vector<16x128xf32>
    %cst = arith.constant 0.000000e+00 : f32
    %40 = vector.broadcast %cst : f32 to vector<16x128xf32>
    %41 = arith.maximumf %39, %40 : vector<16x128xf32>
    %c0_5 = arith.constant 0 : index
    %c0_6 = arith.constant 0 : index
    %42 = vector.load %arg4[%c0_5, %c0_6] : memref<128x128xf32, #tpu.memory_space<vmem>>, vector<128x128xf32>
    %cst_7 = arith.constant dense<0.000000e+00> : vector<16x128xf32>
    %43 = tpu.matmul %41, %42, %cst_7 {dimension_numbers = #tpu.dot_dimension_numbers<[1], [0], [0], [1], [0, 0, 1, 1], [], []>} : vector<16x128xf32>, vector<128x128xf32>, vector<16x128xf32> -> vector<16x128xf32>
    %c0_8 = arith.constant 0 : index
    %c0_9 = arith.constant 0 : index
    %44 = vector.load %arg5[%c0_8, %c0_9] : memref<1x128xf32, #tpu.memory_space<vmem>>, vector<1x128xf32>
    %45 = vector.broadcast %44 : vector<1x128xf32> to vector<16x128xf32>
    %46 = arith.addf %43, %45 : vector<16x128xf32>
    %cst_10 = arith.constant 0.000000e+00 : f32
    %47 = vector.broadcast %cst_10 : f32 to vector<16x128xf32>
    %48 = arith.maximumf %46, %47 : vector<16x128xf32>
    %c0_11 = arith.constant 0 : index
    %c0_12 = arith.constant 0 : index
    %49 = vector.load %arg6[%c0_11, %c0_12] : memref<128x128xf32, #tpu.memory_space<vmem>>, vector<128x128xf32>
    %cst_13 = arith.constant dense<0.000000e+00> : vector<16x128xf32>
    %50 = tpu.matmul %48, %49, %cst_13 {dimension_numbers = #tpu.dot_dimension_numbers<[1], [0], [0], [1], [0, 0, 1, 1], [], []>} : vector<16x128xf32>, vector<128x128xf32>, vector<16x128xf32> -> vector<16x128xf32>
    %c0_14 = arith.constant 0 : index
    %c0_15 = arith.constant 0 : index
    %51 = vector.load %arg7[%c0_14, %c0_15] : memref<1x128xf32, #tpu.memory_space<vmem>>, vector<1x128xf32>
    %52 = vector.broadcast %51 : vector<1x128xf32> to vector<16x128xf32>
    %53 = arith.addf %50, %52 : vector<16x128xf32>
    %cst_16 = arith.constant 5.000000e-01 : f32
    %54 = vector.broadcast %cst_16 : f32 to vector<16x128xf32>
    %55 = arith.cmpf ogt, %53, %54 : vector<16x128xf32>
    %cst_17 = arith.constant 1.000000e+00 : f32
    %cst_18 = arith.constant 0.000000e+00 : f32
    %56 = vector.broadcast %cst_17 : f32 to vector<16x128xf32>
    %57 = vector.broadcast %cst_18 : f32 to vector<16x128xf32>
    %58 = arith.select %55, %56, %57 : vector<16x128xi1>, vector<16x128xf32>
    %c0_19 = arith.constant 0 : index
    %c0_20 = arith.constant 0 : index
    %59 = vector.load %arg8[%c0_19, %c0_20] : memref<3x128xf32, #tpu.memory_space<vmem>>, vector<3x128xf32>
    %c0_21 = arith.constant 0 : index
    %c0_22 = arith.constant 0 : index
    %60 = vector.load %arg9[%c0_21, %c0_22] : memref<1x128xf32, #tpu.memory_space<vmem>>, vector<1x128xf32>
    %61 = vector.extract_strided_slice %58 {offsets = [0, 0], sizes = [16, 1], strides = [1, 1]} : vector<16x128xf32> to vector<16x1xf32>
    %62 = vector.extract_strided_slice %59 {offsets = [0, 0], sizes = [1, 128], strides = [1, 1]} : vector<3x128xf32> to vector<1x128xf32>
    %63 = vector.broadcast %61 : vector<16x1xf32> to vector<16x128xf32>
    %64 = vector.broadcast %62 : vector<1x128xf32> to vector<16x128xf32>
    %65 = arith.mulf %63, %64 : vector<16x128xf32>
    %66 = vector.broadcast %60 : vector<1x128xf32> to vector<16x128xf32>
    %67 = arith.addf %66, %65 : vector<16x128xf32>
    %68 = vector.extract_strided_slice %58 {offsets = [0, 1], sizes = [16, 1], strides = [1, 1]} : vector<16x128xf32> to vector<16x1xf32>
    %69 = vector.extract_strided_slice %59 {offsets = [1, 0], sizes = [1, 128], strides = [1, 1]} : vector<3x128xf32> to vector<1x128xf32>
    %70 = vector.broadcast %68 : vector<16x1xf32> to vector<16x128xf32>
    %71 = vector.broadcast %69 : vector<1x128xf32> to vector<16x128xf32>
    %72 = arith.mulf %70, %71 : vector<16x128xf32>
    %73 = arith.addf %67, %72 : vector<16x128xf32>
    %74 = vector.extract_strided_slice %58 {offsets = [0, 2], sizes = [16, 1], strides = [1, 1]} : vector<16x128xf32> to vector<16x1xf32>
    %75 = vector.extract_strided_slice %59 {offsets = [2, 0], sizes = [1, 128], strides = [1, 1]} : vector<3x128xf32> to vector<1x128xf32>
    %76 = vector.broadcast %74 : vector<16x1xf32> to vector<16x128xf32>
    %77 = vector.broadcast %75 : vector<1x128xf32> to vector<16x128xf32>
    %78 = arith.mulf %76, %77 : vector<16x128xf32>
    %79 = arith.addf %73, %78 : vector<16x128xf32>
    %cst_23 = arith.constant 0.000000e+00 : f32
    %80 = vector.broadcast %cst_23 : f32 to vector<16x128xf32>
    %81 = arith.maximumf %79, %80 : vector<16x128xf32>
    %c0_24 = arith.constant 0 : index
    %c0_25 = arith.constant 0 : index
    %82 = vector.load %arg10[%c0_24, %c0_25] : memref<128x128xf32, #tpu.memory_space<vmem>>, vector<128x128xf32>
    %cst_26 = arith.constant dense<0.000000e+00> : vector<16x128xf32>
    %83 = tpu.matmul %81, %82, %cst_26 {dimension_numbers = #tpu.dot_dimension_numbers<[1], [0], [0], [1], [0, 0, 1, 1], [], []>} : vector<16x128xf32>, vector<128x128xf32>, vector<16x128xf32> -> vector<16x128xf32>
    %c0_27 = arith.constant 0 : index
    %c0_28 = arith.constant 0 : index
    %84 = vector.load %arg11[%c0_27, %c0_28] : memref<1x128xf32, #tpu.memory_space<vmem>>, vector<1x128xf32>
    %85 = vector.broadcast %84 : vector<1x128xf32> to vector<16x128xf32>
    %86 = arith.addf %83, %85 : vector<16x128xf32>
    %cst_29 = arith.constant 0.000000e+00 : f32
    %87 = vector.broadcast %cst_29 : f32 to vector<16x128xf32>
    %88 = arith.maximumf %86, %87 : vector<16x128xf32>
    %c0_30 = arith.constant 0 : index
    %c0_31 = arith.constant 0 : index
    %89 = vector.load %arg12[%c0_30, %c0_31] : memref<128x128xf32, #tpu.memory_space<vmem>>, vector<128x128xf32>
    %cst_32 = arith.constant dense<0.000000e+00> : vector<16x128xf32>
    %90 = tpu.matmul %88, %89, %cst_32 {dimension_numbers = #tpu.dot_dimension_numbers<[1], [0], [0], [1], [0, 0, 1, 1], [], []>} : vector<16x128xf32>, vector<128x128xf32>, vector<16x128xf32> -> vector<16x128xf32>
    %c0_33 = arith.constant 0 : index
    %c0_34 = arith.constant 0 : index
    %91 = vector.load %arg13[%c0_33, %c0_34] : memref<1x128xf32, #tpu.memory_space<vmem>>, vector<1x128xf32>
    %92 = vector.broadcast %91 : vector<1x128xf32> to vector<16x128xf32>
    %93 = arith.addf %90, %92 : vector<16x128xf32>
    %94 = vector.extract_strided_slice %58 {offsets = [0, 0], sizes = [16, 16], strides = [1, 1]} : vector<16x128xf32> to vector<16x16xf32>
    %95 = vector.extract_strided_slice %93 {offsets = [0, 0], sizes = [16, 16], strides = [1, 1]} : vector<16x128xf32> to vector<16x16xf32>
    %96 = tpu.iota {dimensions = array<i32: 1>} : vector<1x16xi32>
    %c3_i32 = arith.constant 3 : i32
    %97 = vector.broadcast %c3_i32 : i32 to vector<1x16xi32>
    %98 = arith.cmpi slt, %96, %97 : vector<1x16xi32>
    %c6_i32 = arith.constant 6 : i32
    %99 = vector.broadcast %c6_i32 : i32 to vector<1x16xi32>
    %100 = arith.cmpi slt, %96, %99 : vector<1x16xi32>
    %cst_35 = arith.constant 5.000000e-01 : f32
    %101 = vector.broadcast %cst_35 : f32 to vector<16x16xf32>
    %102 = arith.cmpf ogt, %95, %101 : vector<16x16xf32>
    %cst_36 = arith.constant 1.000000e+00 : f32
    %cst_37 = arith.constant 0.000000e+00 : f32
    %103 = vector.broadcast %cst_36 : f32 to vector<16x16xf32>
    %104 = vector.broadcast %cst_37 : f32 to vector<16x16xf32>
    %105 = arith.select %102, %103, %104 : vector<16x16xi1>, vector<16x16xf32>
    %c9_i32 = arith.constant 9 : i32
    %106 = vector.broadcast %c9_i32 : i32 to vector<1x16xi32>
    %107 = arith.cmpi slt, %96, %106 : vector<1x16xi32>
    %108 = arith.negf %95 : vector<16x16xf32>
    %109 = math.exp %108 : vector<16x16xf32>
    %cst_38 = arith.constant 1.000000e+00 : f32
    %110 = vector.broadcast %cst_38 : f32 to vector<16x16xf32>
    %111 = arith.addf %110, %109 : vector<16x16xf32>
    %112 = arith.divf %110, %111 : vector<16x16xf32>
    %cst_39 = arith.constant 0.000000e+00 : f32
    %113 = vector.shape_cast %107 : vector<1x16xi1> to vector<1x16xi1>
    %114 = vector.broadcast %113 : vector<1x16xi1> to vector<16x16xi1>
    %115 = vector.broadcast %cst_39 : f32 to vector<16x16xf32>
    %116 = arith.select %114, %112, %115 : vector<16x16xi1>, vector<16x16xf32>
    %117 = vector.shape_cast %100 : vector<1x16xi1> to vector<1x16xi1>
    %118 = vector.broadcast %117 : vector<1x16xi1> to vector<16x16xi1>
    %119 = arith.select %118, %105, %116 : vector<16x16xi1>, vector<16x16xf32>
    %120 = vector.shape_cast %98 : vector<1x16xi1> to vector<1x16xi1>
    %121 = vector.broadcast %120 : vector<1x16xi1> to vector<16x16xi1>
    %122 = arith.select %121, %94, %119 : vector<16x16xi1>, vector<16x16xf32>
    %c0_40 = arith.constant 0 : index
    %c0_41 = arith.constant 0 : index
    %123 = vector.load %arg14[%c0_40, %c0_41] : memref<16x16xf32, #tpu.memory_space<vmem>>, vector<16x16xf32>
    tpu.vector_store %arg14[%c0_40, %c0_41], %122 {strides = array<i32>} : memref<16x16xf32, #tpu.memory_space<vmem>>, vector<16x16xf32>,
    return
  }
  func.func @transform_0(%arg0: i32) -> (i32, i32) {
    %c0_i32 = arith.constant 0 : i32
    %c0_i32_0 = arith.constant 0 : i32
    return %arg0, %c0_i32 : i32, i32
  }
  func.func @transform_1(%arg0: i32) -> (i32, i32) {
    %c0_i32 = arith.constant 0 : i32
    %c0_i32_0 = arith.constant 0 : i32
    %c0_i32_1 = arith.constant 0 : i32
    return %c0_i32, %c0_i32_0 : i32, i32
  }
  func.func @transform_2(%arg0: i32) -> (i32, i32) {
    %c0_i32 = arith.constant 0 : i32
    %c0_i32_0 = arith.constant 0 : i32
    %c0_i32_1 = arith.constant 0 : i32
    return %c0_i32, %c0_i32_0 : i32, i32
  }
  func.func @transform_3(%arg0: i32) -> (i32, i32) {
    %c0_i32 = arith.constant 0 : i32
    %c0_i32_0 = arith.constant 0 : i32
    %c0_i32_1 = arith.constant 0 : i32
    return %c0_i32, %c0_i32_0 : i32, i32
  }
  func.func @transform_4(%arg0: i32) -> (i32, i32) {
    %c0_i32 = arith.constant 0 : i32
    %c0_i32_0 = arith.constant 0 : i32
    %c0_i32_1 = arith.constant 0 : i32
    return %c0_i32, %c0_i32_0 : i32, i32
  }
  func.func @transform_5(%arg0: i32) -> (i32, i32) {
    %c0_i32 = arith.constant 0 : i32
    %c0_i32_0 = arith.constant 0 : i32
    %c0_i32_1 = arith.constant 0 : i32
    return %c0_i32, %c0_i32_0 : i32, i32
  }
  func.func @transform_6(%arg0: i32) -> (i32, i32) {
    %c0_i32 = arith.constant 0 : i32
    %c0_i32_0 = arith.constant 0 : i32
    %c0_i32_1 = arith.constant 0 : i32
    return %c0_i32, %c0_i32_0 : i32, i32
  }
  func.func @transform_7(%arg0: i32) -> (i32, i32) {
    %c0_i32 = arith.constant 0 : i32
    %c0_i32_0 = arith.constant 0 : i32
    %c0_i32_1 = arith.constant 0 : i32
    return %c0_i32, %c0_i32_0 : i32, i32
  }
  func.func @transform_8(%arg0: i32) -> (i32, i32) {
    %c0_i32 = arith.constant 0 : i32
    %c0_i32_0 = arith.constant 0 : i32
    %c0_i32_1 = arith.constant 0 : i32
    return %c0_i32, %c0_i32_0 : i32, i32
  }
  func.func @transform_9(%arg0: i32) -> (i32, i32) {
    %c0_i32 = arith.constant 0 : i32
    %c0_i32_0 = arith.constant 0 : i32
    %c0_i32_1 = arith.constant 0 : i32
    return %c0_i32, %c0_i32_0 : i32, i32
  }
  func.func @transform_10(%arg0: i32) -> (i32, i32) {
    %c0_i32 = arith.constant 0 : i32
    %c0_i32_0 = arith.constant 0 : i32
    %c0_i32_1 = arith.constant 0 : i32
    return %c0_i32, %c0_i32_0 : i32, i32
  }
  func.func @transform_11(%arg0: i32) -> (i32, i32) {
    %c0_i32 = arith.constant 0 : i32
    %c0_i32_0 = arith.constant 0 : i32
    %c0_i32_1 = arith.constant 0 : i32
    return %c0_i32, %c0_i32_0 : i32, i32
  }
  func.func @transform_12(%arg0: i32) -> (i32, i32) {
    %c0_i32 = arith.constant 0 : i32
    %c0_i32_0 = arith.constant 0 : i32
    %c0_i32_1 = arith.constant 0 : i32
    return %c0_i32, %c0_i32_0 : i32, i32
  }
  func.func @transform_13(%arg0: i32) -> (i32, i32) {
    %c0_i32 = arith.constant 0 : i32
    %c0_i32_0 = arith.constant 0 : i32
    return %arg0, %c0_i32 : i32, i32
  }
}

</mosaic_0001>

<llo_original>
// kernel: tpu_custom_call.1
$region0: #{tpu_custom_call.1}
  #allocation0 [shape = 'u32[]', space=smem, size = 0x4, offset = 0x4, fixed_abs, tag = 'smem constant byte address 0x4 - core index']
  #allocation1 [shape = 'u32[72,128]{1,0:T(1,128)}', space=vmem, size = 0x9000, scoped, tag = 'internal scratch']
  %s0 = inlined_call_operand.vmem [shape: f32[16,6], index: 0, kind: input, shape index: {}]
  %s1 = inlined_call_operand.vmem [shape: f32[6,128], index: 1, kind: input, shape index: {}]
  %s2 = inlined_call_operand.vmem [shape: f32[1,128], index: 2, kind: input, shape index: {}]
  %s3 = inlined_call_operand.hbm [shape: f32[128,128], index: 3, kind: input, shape index: {}]
  %s4 = inlined_call_operand.vmem [shape: f32[1,128], index: 4, kind: input, shape index: {}]
  %s5 = inlined_call_operand.hbm [shape: f32[128,128], index: 5, kind: input, shape index: {}]
  %s6 = inlined_call_operand.vmem [shape: f32[1,128], index: 6, kind: input, shape index: {}]
  %s7 = inlined_call_operand.vmem [shape: f32[3,128], index: 7, kind: input, shape index: {}]
  %s8 = inlined_call_operand.vmem [shape: f32[1,128], index: 8, kind: input, shape index: {}]
  %s9 = inlined_call_operand.hbm [shape: f32[128,128], index: 9, kind: input, shape index: {}]
  %s10 = inlined_call_operand.vmem [shape: f32[1,128], index: 10, kind: input, shape index: {}]
  %s11 = inlined_call_operand.hbm [shape: f32[128,128], index: 11, kind: input, shape index: {}]
  %s12 = inlined_call_operand.vmem [shape: f32[1,128], index: 12, kind: input, shape index: {}]
  %s13 = inlined_call_operand.hbm [shape: f32[16,16], index: 13, kind: output, shape index: {}]
  %s14 = sld [smem:[#allocation0]]
  $region78: #{tpu_custom_call.1} parent=0
    _
  %s16 = ssub.s32 1, %s14
  %s17 = scalar_select 0, %s16, %s14
  $region1: #{tpu_custom_call.1} parent=0
    #allocation2 [shape = 'u8[65536]{0}', space=vmem, size = 0x10000, scoped, tag = 'input window, operand 3, single buffered']
    #allocation3 [shape = 's32[1]{0}', space=sflag, size = 0x4, scoped, tag = 'scoped memory for tpu_custom_call.1']
    #allocation4 [shape = 's32[1]{0}', space=sflag, size = 0x4, scoped, tag = 'scoped memory for tpu_custom_call.1']
    #allocation5 [shape = 'u8[65536]{0}', space=vmem, size = 0x10000, scoped, tag = 'input window, operand 5, single buffered']
    #allocation6 [shape = 's32[1]{0}', space=sflag, size = 0x4, scoped, tag = 'scoped memory for tpu_custom_call.1']
    #allocation7 [shape = 'u8[65536]{0}', space=vmem, size = 0x10000, scoped, tag = 'input window, operand 9, single buffered']
    #allocation8 [shape = 'u8[65536]{0}', space=vmem, size = 0x10000, scoped, tag = 'input window, operand 11, single buffered']
    #allocation9 [shape = 's32[1]{0}', space=sflag, size = 0x4, scoped, tag = 'scoped memory for tpu_custom_call.1']
    #allocation10 [shape = 'u8[8192]{0}', space=vmem, size = 0x2000, scoped, tag = 'output window, operand 0, single buffered']
    %18 = vsyncpa [#allocation3], 0
    %19 = vsyncpa [#allocation6], 0
    %20 = vsyncpa [#allocation9], 0
    %21 = vsyncpa [#allocation4], 0
    // Predicated region
    $region2: #{tpu_custom_call.1} parent=1 // pred_check
      _
    $region3: #{tpu_custom_call.1} parent=1 // pred_check_branch
      %23 = sbr.rel (0) target = $region5
    $region4: #{tpu_custom_call.1} parent=1 // pred_region
      _
    $region5: #{tpu_custom_call.1} parent=1 // pred_fallthru
      _
    // Predicated region
    $region6: #{tpu_custom_call.1} parent=1 // pred_check
      _
    $region7: #{tpu_custom_call.1} parent=1 // pred_check_branch
      %25 = sbr.rel (0) target = $region9
    $region8: #{tpu_custom_call.1} parent=1 // pred_region
      _
    $region9: #{tpu_custom_call.1} parent=1 // pred_fallthru
      _
    // Predicated region
    $region10: #{tpu_custom_call.1} parent=1 // pred_check
      _
    $region11: #{tpu_custom_call.1} parent=1 // pred_check_branch
      %27 = sbr.rel (0) target = $region13
    $region12: #{tpu_custom_call.1} parent=1 // pred_region
      _
    $region13: #{tpu_custom_call.1} parent=1 // pred_fallthru
      _
    // Predicated region
    $region14: #{tpu_custom_call.1} parent=1 // pred_check
      _
    $region15: #{tpu_custom_call.1} parent=1 // pred_check_branch
      %29 = sbr.rel (0) target = $region17
    $region16: #{tpu_custom_call.1} parent=1 // pred_region
      %31 = vsyncadd [#allocation3], 0
      %s32 = sshll.u32 %s3, 4
      %s33 = int_to_ptr.hbm [resolvable:$true] %s32
      %s34 = sshll.u32 [#allocation2], 4
      %s35 = int_to_ptr.vmem [resolvable:$true] %s34
      %40 = dma.hbm_to_vmem [thread:$0]  %s33, 2048, %s35, [#allocation3], 128, 128, 8
    $region17: #{tpu_custom_call.1} parent=1 // pred_fallthru
      _
    // Predicated region
    $region18: #{tpu_custom_call.1} parent=1 // pred_check
      _
    $region19: #{tpu_custom_call.1} parent=1 // pred_check_branch
      %42 = sbr.rel (0) target = $region21
    $region20: #{tpu_custom_call.1} parent=1 // pred_region
      _
    $region21: #{tpu_custom_call.1} parent=1 // pred_fallthru
      _
    // Predicated region
    $region22: #{tpu_custom_call.1} parent=1 // pred_check
      _
    $region23: #{tpu_custom_call.1} parent=1 // pred_check_branch
      %44 = sbr.rel (0) target = $region25
    $region24: #{tpu_custom_call.1} parent=1 // pred_region
      %46 = vsyncadd [#allocation6], 0
      %s47 = sshll.u32 %s5, 4
      %s48 = int_to_ptr.hbm [resolvable:$true] %s47
      %s49 = sshll.u32 [#allocation5], 4
      %s50 = int_to_ptr.vmem [resolvable:$true] %s49
      %55 = dma.hbm_to_vmem [thread:$0]  %s48, 2048, %s50, [#allocation6], 128, 128, 8
    $region25: #{tpu_custom_call.1} parent=1 // pred_fallthru
      _
    // Predicated region
    $region26: #{tpu_custom_call.1} parent=1 // pred_check
      _
    $region27: #{tpu_custom_call.1} parent=1 // pred_check_branch
      %57 = sbr.rel (0) target = $region29
    $region28: #{tpu_custom_call.1} parent=1 // pred_region
      _
    $region29: #{tpu_custom_call.1} parent=1 // pred_fallthru
      _
    // Predicated region
    $region30: #{tpu_custom_call.1} parent=1 // pred_check
      _
    $region31: #{tpu_custom_call.1} parent=1 // pred_check_branch
      %59 = sbr.rel (0) target = $region33
    $region32: #{tpu_custom_call.1} parent=1 // pred_region
      _
    $region33: #{tpu_custom_call.1} parent=1 // pred_fallthru
      _
    // Predicated region
    $region34: #{tpu_custom_call.1} parent=1 // pred_check
      _
    $region35: #{tpu_custom_call.1} parent=1 // pred_check_branch
      %61 = sbr.rel (0) target = $region37
    $region36: #{tpu_custom_call.1} parent=1 // pred_region
      _
    $region37: #{tpu_custom_call.1} parent=1 // pred_fallthru
      _
    // Predicated region
    $region38: #{tpu_custom_call.1} parent=1 // pred_check
      _
    $region39: #{tpu_custom_call.1} parent=1 // pred_check_branch
      %63 = sbr.rel (0) target = $region41
    $region40: #{tpu_custom_call.1} parent=1 // pred_region
      %65 = vsyncadd [#allocation6], 0
      %s66 = sshll.u32 %s9, 4
      %s67 = int_to_ptr.hbm [resolvable:$true] %s66
      %s68 = sshll.u32 [#allocation7], 4
      %s69 = int_to_ptr.vmem [resolvable:$true] %s68
      %74 = dma.hbm_to_vmem [thread:$0]  %s67, 2048, %s69, [#allocation6], 128, 128, 8
    $region41: #{tpu_custom_call.1} parent=1 // pred_fallthru
      _
    // Predicated region
    $region42: #{tpu_custom_call.1} parent=1 // pred_check
      _
    $region43: #{tpu_custom_call.1} parent=1 // pred_check_branch
      %76 = sbr.rel (0) target = $region45
    $region44: #{tpu_custom_call.1} parent=1 // pred_region
      _
    $region45: #{tpu_custom_call.1} parent=1 // pred_fallthru
      _
    // Predicated region
    $region46: #{tpu_custom_call.1} parent=1 // pred_check
      _
    $region47: #{tpu_custom_call.1} parent=1 // pred_check_branch
      %78 = sbr.rel (0) target = $region49
    $region48: #{tpu_custom_call.1} parent=1 // pred_region
      %80 = vsyncadd [#allocation9], 0
      %s81 = sshll.u32 %s11, 4
      %s82 = int_to_ptr.hbm [resolvable:$true] %s81
      %s83 = sshll.u32 [#allocation8], 4
      %s84 = int_to_ptr.vmem [resolvable:$true] %s83
      %89 = dma.hbm_to_vmem [thread:$0]  %s82, 2048, %s84, [#allocation9], 128, 128, 8
    $region49: #{tpu_custom_call.1} parent=1 // pred_fallthru
      _
    // Predicated region
    $region50: #{tpu_custom_call.1} parent=1 // pred_check
      _
    $region51: #{tpu_custom_call.1} parent=1 // pred_check_branch
      %91 = sbr.rel (0) target = $region53
    $region52: #{tpu_custom_call.1} parent=1 // pred_region
      _
    $region53: #{tpu_custom_call.1} parent=1 // pred_fallthru
      _
    // Predicated region
    $region54: #{tpu_custom_call.1} parent=1 // pred_check
      _
    $region55: #{tpu_custom_call.1} parent=1 // pred_check_branch
      %93 = sbr.rel (0) target = $region57
    $region56: #{tpu_custom_call.1} parent=1 // pred_region
      %95 = dma.done [#allocation3], 2048
    $region57: #{tpu_custom_call.1} parent=1 // pred_fallthru
      _
    // Predicated region
    $region58: #{tpu_custom_call.1} parent=1 // pred_check
      _
    $region59: #{tpu_custom_call.1} parent=1 // pred_check_branch
      %97 = sbr.rel (0) target = $region61
    $region60: #{tpu_custom_call.1} parent=1 // pred_region
      %99 = dma.done [#allocation6], 2048
    $region61: #{tpu_custom_call.1} parent=1 // pred_fallthru
      _
    // Predicated region
    $region62: #{tpu_custom_call.1} parent=1 // pred_check
      _
    $region63: #{tpu_custom_call.1} parent=1 // pred_check_branch
      %101 = sbr.rel (0) target = $region65
    $region64: #{tpu_custom_call.1} parent=1 // pred_region
      %103 = dma.done [#allocation6], 2048
    $region65: #{tpu_custom_call.1} parent=1 // pred_fallthru
      _
    // Predicated region
    $region66: #{tpu_custom_call.1} parent=1 // pred_check
      _
    $region67: #{tpu_custom_call.1} parent=1 // pred_check_branch
      %105 = sbr.rel (0) target = $region69
    $region68: #{tpu_custom_call.1} parent=1 // pred_region
      %107 = dma.done [#allocation9], 2048
    $region69: #{tpu_custom_call.1} parent=1 // pred_fallthru
      _
    %v108 = vld [vmem:[%s0] sm:$0xff]
    %v109 = vld [vmem:[%s0 + $0x8] sm:$0xff]
    %v110 = vld [vmem:[%s1] sm:$0x3f]
    %v111 = vld [vmem:[%s2] sm:$0x1]
    %113 = vset.pattern.permute.xlu0 0
    %114 = vperm.xlu0 %113, %v108
    %v115 = vpop.permute.xlu0 %114
    %118 = vset.pattern.permute.xlu0 0
    %119 = vperm.xlu0 %118, %v109
    %v120 = vpop.permute.xlu0 %119
    %v122 = vperm.slane %v110, 0
    %v123 = vmul.f32 %v115, %v122
    %v124 = vmul.f32 %v120, %v122
    %v126 = vperm.slane %v111, 0
    %v128 = vadd.f32 %v126, %v123
    %v129 = vadd.f32 %v126, %v124
    %130 = vset.pattern.permute.xlu0 1
    %131 = vperm.xlu0 %130, %v108
    %v132 = vpop.permute.xlu0 %131
    %134 = vset.pattern.permute.xlu0 1
    %135 = vperm.xlu0 %134, %v109
    %v136 = vpop.permute.xlu0 %135
    %v138 = vperm.slane %v110, 1
    %v139 = vmul.f32 %v132, %v138
    %v140 = vmul.f32 %v136, %v138
    %v141 = vadd.f32 %v128, %v139
    %v142 = vadd.f32 %v129, %v140
    %143 = vset.pattern.permute.xlu0 2
    %144 = vperm.xlu0 %143, %v108
    %v145 = vpop.permute.xlu0 %144
    %147 = vset.pattern.permute.xlu0 2
    %148 = vperm.xlu0 %147, %v109
    %v149 = vpop.permute.xlu0 %148
    %v151 = vperm.slane %v110, 2
    %v152 = vmul.f32 %v145, %v151
    %v153 = vmul.f32 %v149, %v151
    %v154 = vadd.f32 %v141, %v152
    %v155 = vadd.f32 %v142, %v153
    %156 = vset.pattern.permute.xlu0 3
    %157 = vperm.xlu0 %156, %v108
    %v158 = vpop.permute.xlu0 %157
    %160 = vset.pattern.permute.xlu0 3
    %161 = vperm.xlu0 %160, %v109
    %v162 = vpop.permute.xlu0 %161
    %v164 = vperm.slane %v110, 3
    %v165 = vmul.f32 %v158, %v164
    %v166 = vmul.f32 %v162, %v164
    %v167 = vadd.f32 %v154, %v165
    %v168 = vadd.f32 %v155, %v166
    %169 = vset.pattern.permute.xlu0 4
    %170 = vperm.xlu0 %169, %v108
    %v171 = vpop.permute.xlu0 %170
    %173 = vset.pattern.permute.xlu0 4
    %174 = vperm.xlu0 %173, %v109
    %v175 = vpop.permute.xlu0 %174
    %v177 = vperm.slane %v110, 4
    %v178 = vmul.f32 %v171, %v177
    %v179 = vmul.f32 %v175, %v177
    %v180 = vadd.f32 %v167, %v178
    %v181 = vadd.f32 %v168, %v179
    %182 = vset.pattern.permute.xlu0 5
    %183 = vperm.xlu0 %182, %v108
    %v184 = vpop.permute.xlu0 %183
    %186 = vset.pattern.permute.xlu0 5
    %187 = vperm.xlu0 %186, %v109
    %v188 = vpop.permute.xlu0 %187
    %v190 = vperm.slane %v110, 5
    %v191 = vmul.f32 %v184, %v190
    %v192 = vmul.f32 %v188, %v190
    %v193 = vadd.f32 %v180, %v191
    %v194 = vadd.f32 %v181, %v192
    %v195 = vmax.f32 %v193, 0.0
    %v196 = vmax.f32 %v194, 0.0
    %v197 = vld [vmem:[#allocation2] sm:$0xff]
    %v198 = vld [vmem:[#allocation2 + $0x8] sm:$0xff]
    %v199 = vld [vmem:[#allocation2 + $0x10] sm:$0xff]
    %v200 = vld [vmem:[#allocation2 + $0x18] sm:$0xff]
    %v201 = vld [vmem:[#allocation2 + $0x20] sm:$0xff]
    %v202 = vld [vmem:[#allocation2 + $0x28] sm:$0xff]
    %v203 = vld [vmem:[#allocation2 + $0x30] sm:$0xff]
    %v204 = vld [vmem:[#allocation2 + $0x38] sm:$0xff]
    %v205 = vld [vmem:[#allocation2 + $0x40] sm:$0xff]
    %v206 = vld [vmem:[#allocation2 + $0x48] sm:$0xff]
    %v207 = vld [vmem:[#allocation2 + $0x50] sm:$0xff]
    %v208 = vld [vmem:[#allocation2 + $0x58] sm:$0xff]
    %v209 = vld [vmem:[#allocation2 + $0x60] sm:$0xff]
    %v210 = vld [vmem:[#allocation2 + $0x68] sm:$0xff]
    %v211 = vld [vmem:[#allocation2 + $0x70] sm:$0xff]
    %v212 = vld [vmem:[#allocation2 + $0x78] sm:$0xff]
    %v213 = vld [vmem:[%s4] sm:$0x1]
    %v215 = vperm.slane %v213, 0
    %217 = vmatpush.msra.mxu0 %v212
    %218 = vmatpush.msra.mxu0 %v211
    %219 = vmatpush.msra.mxu0 %v210
    %220 = vmatpush.msra.mxu0 %v209
    %221 = vmatpush.msra.mxu0 %v208
    %222 = vmatpush.msra.mxu0 %v207
    %223 = vmatpush.msra.mxu0 %v206
    %224 = vmatpush.msra.mxu0 %v205
    %225 = vmatpush.msra.mxu0 %v204
    %226 = vmatpush.msra.mxu0 %v203
    %227 = vmatpush.msra.mxu0 %v202
    %228 = vmatpush.msra.mxu0 %v201
    %229 = vmatpush.msra.mxu0 %v200
    %230 = vmatpush.msra.mxu0 %v199
    %231 = vmatpush.msra.mxu0 %v198
    %232 = vmatpush.msra.mxu0 %v197
    %233 = vmatmul.f32.gmra.mxu0 %v195
    %v234 = vpop.f32.mrf.mxu0
    %v235 = vadd.f32 %v215, %v234
    %236 = vmatmul.f32.gmra.mxu0 %v196
    %v237 = vpop.f32.mrf.mxu0
    %v238 = vadd.f32 %v215, %v237
    %239 = vdwg.mxu0
    %v240 = vmax.f32 %v235, 0.0
    %v241 = vmax.f32 %v238, 0.0
    %v242 = vld [vmem:[#allocation5] sm:$0xff]
    %v243 = vld [vmem:[#allocation5 + $0x8] sm:$0xff]
    %v244 = vld [vmem:[#allocation5 + $0x10] sm:$0xff]
    %v245 = vld [vmem:[#allocation5 + $0x18] sm:$0xff]
    %v246 = vld [vmem:[#allocation5 + $0x20] sm:$0xff]
    %v247 = vld [vmem:[#allocation5 + $0x28] sm:$0xff]
    %v248 = vld [vmem:[#allocation5 + $0x30] sm:$0xff]
    %v249 = vld [vmem:[#allocation5 + $0x38] sm:$0xff]
    %v250 = vld [vmem:[#allocation5 + $0x40] sm:$0xff]
    %v251 = vld [vmem:[#allocation5 + $0x48] sm:$0xff]
    %v252 = vld [vmem:[#allocation5 + $0x50] sm:$0xff]
    %v253 = vld [vmem:[#allocation5 + $0x58] sm:$0xff]
    %v254 = vld [vmem:[#allocation5 + $0x60] sm:$0xff]
    %v255 = vld [vmem:[#allocation5 + $0x68] sm:$0xff]
    %v256 = vld [vmem:[#allocation5 + $0x70] sm:$0xff]
    %v257 = vld [vmem:[#allocation5 + $0x78] sm:$0xff]
    %v258 = vld [vmem:[%s6] sm:$0x1]
    %v260 = vperm.slane %v258, 0
    %262 = vmatpush.msra.mxu0 %v257
    %263 = vmatpush.msra.mxu0 %v256
    %264 = vmatpush.msra.mxu0 %v255
    %265 = vmatpush.msra.mxu0 %v254
    %266 = vmatpush.msra.mxu0 %v253
    %267 = vmatpush.msra.mxu0 %v252
    %268 = vmatpush.msra.mxu0 %v251
    %269 = vmatpush.msra.mxu0 %v250
    %270 = vmatpush.msra.mxu0 %v249
    %271 = vmatpush.msra.mxu0 %v248
    %272 = vmatpush.msra.mxu0 %v247
    %273 = vmatpush.msra.mxu0 %v246
    %274 = vmatpush.msra.mxu0 %v245
    %275 = vmatpush.msra.mxu0 %v244
    %276 = vmatpush.msra.mxu0 %v243
    %277 = vmatpush.msra.mxu0 %v242
    %278 = vmatmul.f32.gmra.mxu0 %v240
    %v279 = vpop.f32.mrf.mxu0
    %v280 = vadd.f32 %v260, %v279
    %281 = vmatmul.f32.gmra.mxu0 %v241
    %v282 = vpop.f32.mrf.mxu0
    %v283 = vadd.f32 %v260, %v282
    %284 = vdwg.mxu0
    %vm285 = vcmp.gt.f32.partialorder %v280, 0.5
    %vm286 = vcmp.gt.f32.partialorder %v283, 0.5
    %v287 = vsel %vm285, 1.0, 0.0
    %v288 = vsel %vm286, 1.0, 0.0
    %v289 = vld [vmem:[%s7] sm:$0x7]
    %v290 = vld [vmem:[%s8] sm:$0x1]
    %292 = vset.pattern.permute.xlu0 0
    %293 = vperm.xlu0 %292, %v287
    %v294 = vpop.permute.xlu0 %293
    %297 = vset.pattern.permute.xlu0 0
    %298 = vperm.xlu0 %297, %v288
    %v299 = vpop.permute.xlu0 %298
    %v301 = vperm.slane %v289, 0
    %v302 = vmul.f32 %v294, %v301
    %v303 = vmul.f32 %v299, %v301
    %v305 = vperm.slane %v290, 0
    %v307 = vadd.f32 %v305, %v302
    %v308 = vadd.f32 %v305, %v303
    %309 = vset.pattern.permute.xlu0 1
    %310 = vperm.xlu0 %309, %v287
    %v311 = vpop.permute.xlu0 %310
    %313 = vset.pattern.permute.xlu0 1
    %314 = vperm.xlu0 %313, %v288
    %v315 = vpop.permute.xlu0 %314
    %v317 = vperm.slane %v289, 1
    %v318 = vmul.f32 %v311, %v317
    %v319 = vmul.f32 %v315, %v317
    %v320 = vadd.f32 %v307, %v318
    %v321 = vadd.f32 %v308, %v319
    %322 = vset.pattern.permute.xlu0 2
    %323 = vperm.xlu0 %322, %v287
    %v324 = vpop.permute.xlu0 %323
    %326 = vset.pattern.permute.xlu0 2
    %327 = vperm.xlu0 %326, %v288
    %v328 = vpop.permute.xlu0 %327
    %v330 = vperm.slane %v289, 2
    %v331 = vmul.f32 %v324, %v330
    %v332 = vmul.f32 %v328, %v330
    %v333 = vadd.f32 %v320, %v331
    %v334 = vadd.f32 %v321, %v332
    %v335 = vmax.f32 %v333, 0.0
    %v336 = vmax.f32 %v334, 0.0
    %v337 = vld [vmem:[#allocation7] sm:$0xff]
    %v338 = vld [vmem:[#allocation7 + $0x8] sm:$0xff]
    %v339 = vld [vmem:[#allocation7 + $0x10] sm:$0xff]
    %v340 = vld [vmem:[#allocation7 + $0x18] sm:$0xff]
    %v341 = vld [vmem:[#allocation7 + $0x20] sm:$0xff]
    %v342 = vld [vmem:[#allocation7 + $0x28] sm:$0xff]
    %v343 = vld [vmem:[#allocation7 + $0x30] sm:$0xff]
    %v344 = vld [vmem:[#allocation7 + $0x38] sm:$0xff]
    %v345 = vld [vmem:[#allocation7 + $0x40] sm:$0xff]
    %v346 = vld [vmem:[#allocation7 + $0x48] sm:$0xff]
    %v347 = vld [vmem:[#allocation7 + $0x50] sm:$0xff]
    %v348 = vld [vmem:[#allocation7 + $0x58] sm:$0xff]
    %v349 = vld [vmem:[#allocation7 + $0x60] sm:$0xff]
    %v350 = vld [vmem:[#allocation7 + $0x68] sm:$0xff]
    %v351 = vld [vmem:[#allocation7 + $0x70] sm:$0xff]
    %v352 = vld [vmem:[#allocation7 + $0x78] sm:$0xff]
    %v353 = vld [vmem:[%s10] sm:$0x1]
    %v355 = vperm.slane %v353, 0
    %357 = vmatpush.msra.mxu0 %v352
    %358 = vmatpush.msra.mxu0 %v351
    %359 = vmatpush.msra.mxu0 %v350
    %360 = vmatpush.msra.mxu0 %v349
    %361 = vmatpush.msra.mxu0 %v348
    %362 = vmatpush.msra.mxu0 %v347
    %363 = vmatpush.msra.mxu0 %v346
    %364 = vmatpush.msra.mxu0 %v345
    %365 = vmatpush.msra.mxu0 %v344
    %366 = vmatpush.msra.mxu0 %v343
    %367 = vmatpush.msra.mxu0 %v342
    %368 = vmatpush.msra.mxu0 %v341
    %369 = vmatpush.msra.mxu0 %v340
    %370 = vmatpush.msra.mxu0 %v339
    %371 = vmatpush.msra.mxu0 %v338
    %372 = vmatpush.msra.mxu0 %v337
    %373 = vmatmul.f32.gmra.mxu0 %v335
    %v374 = vpop.f32.mrf.mxu0
    %v375 = vadd.f32 %v355, %v374
    %376 = vmatmul.f32.gmra.mxu0 %v336
    %v377 = vpop.f32.mrf.mxu0
    %v378 = vadd.f32 %v355, %v377
    %379 = vdwg.mxu0
    %v380 = vmax.f32 %v375, 0.0
    %v381 = vmax.f32 %v378, 0.0
    %v382 = vld [vmem:[#allocation8] sm:$0xff]
    %v383 = vld [vmem:[#allocation8 + $0x8] sm:$0xff]
    %v384 = vld [vmem:[#allocation8 + $0x10] sm:$0xff]
    %v385 = vld [vmem:[#allocation8 + $0x18] sm:$0xff]
    %v386 = vld [vmem:[#allocation8 + $0x20] sm:$0xff]
    %v387 = vld [vmem:[#allocation8 + $0x28] sm:$0xff]
    %v388 = vld [vmem:[#allocation8 + $0x30] sm:$0xff]
    %v389 = vld [vmem:[#allocation8 + $0x38] sm:$0xff]
    %v390 = vld [vmem:[#allocation8 + $0x40] sm:$0xff]
    %v391 = vld [vmem:[#allocation8 + $0x48] sm:$0xff]
    %v392 = vld [vmem:[#allocation8 + $0x50] sm:$0xff]
    %v393 = vld [vmem:[#allocation8 + $0x58] sm:$0xff]
    %v394 = vld [vmem:[#allocation8 + $0x60] sm:$0xff]
    %v395 = vld [vmem:[#allocation8 + $0x68] sm:$0xff]
    %v396 = vld [vmem:[#allocation8 + $0x70] sm:$0xff]
    %v397 = vld [vmem:[#allocation8 + $0x78] sm:$0xff]
    %v398 = vld [vmem:[%s12] sm:$0x1]
    %v400 = vperm.slane %v398, 0
    %402 = vmatpush.msra.mxu0 %v397
    %403 = vmatpush.msra.mxu0 %v396
    %404 = vmatpush.msra.mxu0 %v395
    %405 = vmatpush.msra.mxu0 %v394
    %406 = vmatpush.msra.mxu0 %v393
    %407 = vmatpush.msra.mxu0 %v392
    %408 = vmatpush.msra.mxu0 %v391
    %409 = vmatpush.msra.mxu0 %v390
    %410 = vmatpush.msra.mxu0 %v389
    %411 = vmatpush.msra.mxu0 %v388
    %412 = vmatpush.msra.mxu0 %v387
    %413 = vmatpush.msra.mxu0 %v386
    %414 = vmatpush.msra.mxu0 %v385
    %415 = vmatpush.msra.mxu0 %v384
    %416 = vmatpush.msra.mxu0 %v383
    %417 = vmatpush.msra.mxu0 %v382
    %418 = vmatmul.f32.gmra.mxu0 %v380
    %v419 = vpop.f32.mrf.mxu0
    %v420 = vadd.f32 %v400, %v419
    %421 = vmatmul.f32.gmra.mxu0 %v381
    %v422 = vpop.f32.mrf.mxu0
    %v423 = vadd.f32 %v400, %v422
    %424 = vdwg.mxu0
    %v425 = vlaneseq
    %v426 = vand.u32 %v425, 127
    %vm427 = vcmp.lt.s32.totalorder %v426, 3
    %vm428 = vcmp.lt.s32.totalorder %v426, 6
    %vm429 = vcmp.gt.f32.partialorder %v420, 0.5
    %vm430 = vcmp.gt.f32.partialorder %v423, 0.5
    %v431 = vsel %vm429, 1.0, 0.0
    %v432 = vsel %vm430, 1.0, 0.0
    %vm433 = vcmp.lt.s32.totalorder %v426, 9
    %v434 = vxor.u32 %v420, 2147483648
    %v435 = vxor.u32 %v423, 2147483648
    %v436 = vmul.f32 %v434, 1.442695
    %v437 = vpow.pop %v436
    %v438 = vmul.f32 %v435, 1.442695
    %v439 = vpow.pop %v438
    %v440 = vadd.f32 %v437, 1.0
    %v441 = vadd.f32 %v439, 1.0
    %v442 = vrcp.pop %v440
    %v443 = vmul.f32 %v440, %v442
    %v444 = vsub.f32 1.0, %v443
    %v445 = vmul.f32 %v442, %v444
    %v446 = vadd.f32 %v442, %v445
    %vm447 = vweird.f32 %v440
    %vm448 = vweird.f32 %v442
    %vm449 = vmor %vm447, %vm448
    %v450 = vsel %vm449, %v442, %v446
    %v451 = vand.u32 2147483647, %v440
    %vm452 = vcmp.eq.f32.partialorder %v451, 8.507059e+37
    %v453 = vand.u32 %v440, 2147483648
    %v454 = vor.u32 1.1754944e-38, %v453
    %v455 = vsel %vm452, %v454, %v450
    %v456 = vmul.f32 1.0, %v455
    %v457 = vrcp.pop %v441
    %v458 = vmul.f32 %v441, %v457
    %v459 = vsub.f32 1.0, %v458
    %v460 = vmul.f32 %v457, %v459
    %v461 = vadd.f32 %v457, %v460
    %vm462 = vweird.f32 %v441
    %vm463 = vweird.f32 %v457
    %vm464 = vmor %vm462, %vm463
    %v465 = vsel %vm464, %v457, %v461
    %v466 = vand.u32 2147483647, %v441
    %vm467 = vcmp.eq.f32.partialorder %v466, 8.507059e+37
    %v468 = vand.u32 %v441, 2147483648
    %v469 = vor.u32 1.1754944e-38, %v468
    %v470 = vsel %vm467, %v469, %v465
    %v471 = vmul.f32 1.0, %v470
    %v472 = vsel %vm433, 1, 0
    %vm473 = vcmp.eq.s32.totalorder %v472, 1
    %v474 = vsel %vm473, %v456, 0.0
    %v475 = vsel %vm473, %v471, 0.0
    %v476 = vsel %vm428, 1, 0
    %vm477 = vcmp.eq.s32.totalorder %v476, 1
    %v478 = vsel %vm477, %v431, %v474
    %v479 = vsel %vm477, %v432, %v475
    %v480 = vsel %vm427, 1, 0
    %vm481 = vcmp.eq.s32.totalorder %v480, 1
    %v482 = vsel %vm481, %v287, %v478
    %v483 = vsel %vm481, %v288, %v479
    %vm484 = vcmask 130048
    %485 = vst.msk [vmem:[#allocation10] sm:$0xff] %vm484, %v482
    %486 = vst.msk [vmem:[#allocation10 + $0x8] sm:$0xff] %vm484, %v483
    // Predicated region
    $region70: #{tpu_custom_call.1} parent=1 // pred_check
      _
    $region71: #{tpu_custom_call.1} parent=1 // pred_check_branch
      %488 = sbr.rel (0) target = $region73
    $region72: #{tpu_custom_call.1} parent=1 // pred_region
      %490 = vsyncadd [#allocation4], 0
      %s491 = sshll.u32 [#allocation10], 4
      %s492 = int_to_ptr.vmem [resolvable:$true] %s491
      %s493 = sshll.u32 %s13, 4
      %s494 = int_to_ptr.hbm [resolvable:$true] %s493
      %499 = dma.vmem_to_hbm [thread:$0]  %s492, 256, %s494, [#allocation4], 128, 128, 8
    $region73: #{tpu_custom_call.1} parent=1 // pred_fallthru
      _
    // Predicated region
    $region74: #{tpu_custom_call.1} parent=1 // pred_check
      _
    $region75: #{tpu_custom_call.1} parent=1 // pred_check_branch
      %501 = sbr.rel (0) target = $region77
    $region76: #{tpu_custom_call.1} parent=1 // pred_region
      %503 = dma.done [#allocation4], 256
    $region77: #{tpu_custom_call.1} parent=1 // pred_fallthru
      _
    %504 = vsyncpa [#allocation3], 1
    %505 = vsyncpa [#allocation6], 1
    %506 = vsyncpa [#allocation9], 1
    %507 = vsyncpa [#allocation4], 1

</llo_original>
